<compile_context>
chip_gen: v6e
topology: v6e:2x2x1
jax: 0.10.0
libtpu: 0.0.40
codegen_flags: <defaults>
</compile_context>

<pallas_src>
import functools
import math

import jax
import jax.numpy as jnp
from jax.experimental import pallas as pl
from jax.experimental.pallas import tpu as pltpu


def _make_taps(pad):
    """Cross-stencil offsets: center, then horizontal (dh=0), then vertical (dw=0)."""
    taps = [(0, 0)]
    for d in range(1, pad + 1):
        taps.append((0, -d))
        taps.append((0, d))
    for d in range(1, pad + 1):
        taps.append((-d, 0))
        taps.append((d, 0))
    return taps


def fold_inception_weights(ws_h, bs_h, ws_v, bs_v, w_1x1, b_1x1, num_kernels):
    """Fold the module's conv weights/biases (and the final mean) into per-tap
    (Cout, Cin) matrices.  Returns (w_taps [T, Cout, Cin], bias [Cout], taps)."""
    pad = num_kernels // 2
    taps = _make_taps(pad)
    num_convs = num_kernels // 2 * 2 + 1
    cout, cin = w_1x1.shape[0], w_1x1.shape[1]

    w_taps = jnp.zeros((len(taps), cout, cin), jnp.float32)
    w_taps = w_taps.at[0].add(w_1x1[:, :, 0, 0])
    bias = b_1x1
    for i in range(num_kernels // 2):
        klen = 2 * i + 3
        c = i + 1  # padding == center tap index (cross-correlation, no flip)
        for j in range(klen):
            w_taps = w_taps.at[taps.index((0, j - c))].add(ws_h[i][:, :, 0, j])
            w_taps = w_taps.at[taps.index((j - c, 0))].add(ws_v[i][:, :, j, 0])
        bias = bias + bs_h[i] + bs_v[i]
    return w_taps / num_convs, bias / num_convs, taps


def _inception_kernel(xb_ref, xn_ref, w_ref, b_ref, o_ref, xcat_ref, stack_ref,
                      *, taps, tile, wp, pad, cin_p, compute_dtype):
    # xb_ref / xn_ref: (Cin_p, tile)   current / next tile of the padded, flattened input
    # w_ref:          (Cout, T*Cin_p)  folded weights, taps fused into the contraction axis
    # b_ref:          (Cout, 1)        folded bias (mean included)
    # o_ref:          (Cout, tile)     output tile
    # xcat_ref:       (Cin_p, 2*tile)  scratch: current || next (aligned stores)
    # stack_ref:      (T*Cin_p, tile)  scratch: stacked cross patches (im2col-lite)
    xcat_ref[:, :tile] = xb_ref[...]
    xcat_ref[:, tile:] = xn_ref[...]

    for t, (dh, dw) in enumerate(taps):
        off = (pad + dh) * wp + dw          # static, 0 <= off <= 2*pad*wp <= tile
        stack_ref[t * cin_p:(t + 1) * cin_p, :] = (
            xcat_ref[:, off:off + tile].astype(compute_dtype))

    # Single MXU matmul with K = T*Cin_p (vs 13 tiny K=Cin dots previously).
    acc = jnp.dot(w_ref[...], stack_ref[...], preferred_element_type=jnp.float32)
    o_ref[...] = (acc + b_ref[...]).astype(o_ref.dtype)


def inception_block_v2(x, w_taps, bias, taps, num_kernels, *, tile=None,
                       compute_dtype=jnp.float32):
    """x: (B, Cin, H, W) float32 -> (B, Cout, H, W) float32 (NCHW, like PyTorch).

    compute_dtype=jnp.bfloat16 enables bf16 MXU feeds on v6e/v7x (f32 accumulate);
    kept f32 by default to preserve the tight validation tolerance.
    """
    batch, cin, height, width = x.shape
    num_taps, cout, _ = w_taps.shape
    pad = num_kernels // 2
    hp, wp = height + 2 * pad, width + 2 * pad

    # Pad Cin to a sublane multiple so every per-tap scratch store is aligned.
    cin_p = ((cin + 7) // 8) * 8
    if cin_p != cin:
        x = jnp.pad(x, ((0, 0), (0, cin_p - cin), (0, 0), (0, 0)))
        w_taps = jnp.pad(w_taps, ((0, 0), (0, 0), (0, cin_p - cin)))
    k = num_taps * cin_p
    # Taps fused into the contraction axis (tap-major, Cin-minor) to match the
    # stacking order built in the kernel scratch.
    w_flat = jnp.transpose(w_taps, (1, 0, 2)).reshape(cout, k).astype(compute_dtype)
    bias2d = bias.reshape(cout, 1).astype(jnp.float32)

    # Zero-pad H and W host-side, fold batch onto the padded row axis, add `pad`
    # extra zero rows at the very top/bottom, then flatten row-major.  Every
    # cross tap becomes a static nonnegative lane offset (no masks); the 2*pad
    # border rows/cols per image hold garbage that is cropped after the kernel
    # (extra compute factor (1+2p/H)(1+2p/W), negligible at production sizes).
    x_pad = jnp.pad(x.astype(jnp.float32),
                    ((0, 0), (0, 0), (pad, pad), (pad, pad)))
    x_rows = jnp.transpose(x_pad, (1, 0, 2, 3)).reshape(cin_p, batch * hp, wp)
    x_rows = jnp.pad(x_rows, ((0, 0), (pad, pad), (0, 0)))
    out_total = batch * hp * wp
    in_total = (batch * hp + 2 * pad) * wp
    x_flat = x_rows.reshape(cin_p, in_total)

    # Spatial tile: multiple of 128 (dense, unmasked vst) and >= the stencil
    # halo 2*pad*wp so current + next tile always cover every tap window.
    halo = 2 * pad * wp
    min_tile = pl.cdiv(max(halo, 128), 128) * 128
    if tile is None:
        tile = 512
        # Keep >= 4 grid steps when possible (2 TCs on v7x x pipeline depth).
        while tile > min_tile and pl.cdiv(out_total, tile) < 4:
            tile -= 128
    tile = max(min_tile, (tile // 128) * 128)
    n_tiles = pl.cdiv(out_total, tile)
    nb_last = (in_total - 1) // tile   # last halo block index that starts in bounds

    kernel = functools.partial(
        _inception_kernel, taps=tuple(taps), tile=tile, wp=wp, pad=pad,
        cin_p=cin_p, compute_dtype=compute_dtype)

    out_flat = pl.pallas_call(
        kernel,
        out_shape=jax.ShapeDtypeStruct((cout, out_total), jnp.float32),
        grid=(n_tiles,),
        in_specs=[
            pl.BlockSpec((cin_p, tile), lambda s: (0, s)),             # current tile
            pl.BlockSpec((cin_p, tile),
                         lambda s: (0, jnp.minimum(s + 1, nb_last))),  # halo (next tile)
            pl.BlockSpec((cout, k), lambda s: (0, 0)),                 # fused weights
            pl.BlockSpec((cout, 1), lambda s: (0, 0)),                 # fused bias
        ],
        out_specs=pl.BlockSpec((cout, tile), lambda s: (0, s)),
        scratch_shapes=[
            pltpu.VMEM((cin_p, 2 * tile), jnp.float32),   # current || next concat
            pltpu.VMEM((k, tile), compute_dtype),         # stacked cross patches
        ],
        compiler_params=pltpu.CompilerParams(
            dimension_semantics=("parallel",),
            vmem_limit_bytes=32 * 1024 * 1024),
    )(x_flat, x_flat, w_flat, bias2d)

    # TODO(synk): for very large Cin, skip the in-VMEM stacking and tile K to the
    # MXU contraction depth instead (per-tap partial dots into an f32 accumulator).
    out = out_flat.reshape(cout, batch, hp, wp)[:, :, pad:pad + height,
                                                pad:pad + width]
    return jnp.transpose(out, (1, 0, 2, 3))


def _reference(x, ws_h, bs_h, ws_v, bs_v, w_1x1, b_1x1, num_kernels):
    """Pure-JAX mirror of the PyTorch forward (7 convs, stack, mean)."""
    dn = ('NCHW', 'OIHW', 'NCHW')
    outs = []
    for i in range(num_kernels // 2):
        c = i + 1
        o = jax.lax.conv_general_dilated(
            x, ws_h[i], (1, 1), [(0, 0), (c, c)], dimension_numbers=dn,
            precision=jax.lax.Precision.HIGHEST)
        outs.append(o + bs_h[i][None, :, None, None])
        o = jax.lax.conv_general_dilated(
            x, ws_v[i], (1, 1), [(c, c), (0, 0)], dimension_numbers=dn,
            precision=jax.lax.Precision.HIGHEST)
        outs.append(o + bs_v[i][None, :, None, None])
    o = jax.lax.conv_general_dilated(
        x, w_1x1, (1, 1), [(0, 0), (0, 0)], dimension_numbers=dn,
        precision=jax.lax.Precision.HIGHEST)
    outs.append(o + b_1x1[None, :, None, None])
    return jnp.stack(outs, axis=-1).mean(-1)


if __name__ == "__main__":
    batch, cin, cout, height, width = 2, 4, 8, 16, 16
    num_kernels = 6

    key = jax.random.PRNGKey(0)
    key, kx = jax.random.split(key)
    x = jax.random.normal(kx, (batch, cin, height, width), jnp.float32)

    # Kaiming-normal(fan_out, relu) conv weights like the PyTorch module; biases
    # are small random values so the bias path is actually exercised.
    ws_h, bs_h, ws_v, bs_v = [], [], [], []
    for i in range(num_kernels // 2):
        klen = 2 * i + 3
        std = math.sqrt(2.0 / (cout * klen))
        key, k1, k2, k3, k4 = jax.random.split(key, 5)
        ws_h.append(jax.random.normal(k1, (cout, cin, 1, klen), jnp.float32) * std)
        bs_h.append(jax.random.normal(k2, (cout,), jnp.float32) * 0.1)
        ws_v.append(jax.random.normal(k3, (cout, cin, klen, 1), jnp.float32) * std)
        bs_v.append(jax.random.normal(k4, (cout,), jnp.float32) * 0.1)
    key, k1, k2 = jax.random.split(key, 3)
    w_1x1 = jax.random.normal(k1, (cout, cin, 1, 1), jnp.float32) * math.sqrt(2.0 / cout)
    b_1x1 = jax.random.normal(k2, (cout,), jnp.float32) * 0.1

    w_taps, bias, taps = fold_inception_weights(
        ws_h, bs_h, ws_v, bs_v, w_1x1, b_1x1, num_kernels)

    out = inception_block_v2(x, w_taps, bias, taps, num_kernels)
    out = jax.block_until_ready(out)

    ref = _reference(x, ws_h, bs_h, ws_v, bs_v, w_1x1, b_1x1, num_kernels)
    assert out.shape == (batch, cout, height, width)
    assert out.dtype == jnp.float32
    assert jnp.allclose(out, ref, atol=2e-3, rtol=2e-3), \
        float(jnp.max(jnp.abs(out - ref)))

    print("KERNEL_OK")
</pallas_src>

<mosaic_0001>
module attributes {stable_mosaic.version = 11 : i64} {
  func.func @_inception_kernel(%arg0: i32, %arg1: memref<8x256xf32, #tpu.memory_space<vmem>>, %arg2: memref<8x256xf32, #tpu.memory_space<vmem>>, %arg3: memref<8x104xf32, #tpu.memory_space<vmem>>, %arg4: memref<8x1xf32, #tpu.memory_space<vmem>>, %arg5: memref<8x256xf32, #tpu.memory_space<vmem>>, %arg6: memref<8x512xf32, #tpu.memory_space<vmem>>, %arg7: memref<104x256xf32, #tpu.memory_space<vmem>>) attributes {dimension_semantics = [#tpu.dimension_semantics<parallel>], iteration_bounds = array<i64: 4>, scalar_prefetch = 0 : i64, scratch_operands = 2 : i64, tpu.core_type = #tpu.core_type<tc>, window_params = [{transform_indices = @transform_0, window_bounds = array<i64: 8, 256>}, {transform_indices = @transform_1, window_bounds = array<i64: 8, 256>}, {pipeline_mode = #tpu.pipeline_mode<synchronous>, transform_indices = @transform_2, window_bounds = array<i64: 8, 104>}, {pipeline_mode = #tpu.pipeline_mode<synchronous>, transform_indices = @transform_3, window_bounds = array<i64: 8, 1>}, {transform_indices = @transform_4, window_bounds = array<i64: 8, 256>}]} {
    %c0 = arith.constant 0 : index
    %c0_0 = arith.constant 0 : index
    %0 = vector.load %arg1[%c0, %c0_0] : memref<8x256xf32, #tpu.memory_space<vmem>>, vector<8x256xf32>
    %c0_1 = arith.constant 0 : index
    %c0_2 = arith.constant 0 : index
    %1 = vector.load %arg6[%c0_1, %c0_2] : memref<8x512xf32, #tpu.memory_space<vmem>>, vector<8x256xf32>
    tpu.vector_store %arg6[%c0_1, %c0_2], %0 {strides = array<i32>} : memref<8x512xf32, #tpu.memory_space<vmem>>, vector<8x256xf32>,
    %c0_3 = arith.constant 0 : index
    %c0_4 = arith.constant 0 : index
    %2 = vector.load %arg2[%c0_3, %c0_4] : memref<8x256xf32, #tpu.memory_space<vmem>>, vector<8x256xf32>
    %c0_5 = arith.constant 0 : index
    %c256 = arith.constant 256 : index
    %3 = vector.load %arg6[%c0_5, %c256] : memref<8x512xf32, #tpu.memory_space<vmem>>, vector<8x256xf32>
    tpu.vector_store %arg6[%c0_5, %c256], %2 {strides = array<i32>} : memref<8x512xf32, #tpu.memory_space<vmem>>, vector<8x256xf32>,
    %c0_6 = arith.constant 0 : index
    %c66 = arith.constant 66 : index
    %4 = vector.load %arg6[%c0_6, %c66] : memref<8x512xf32, #tpu.memory_space<vmem>>, vector<8x256xf32>
    %c0_7 = arith.constant 0 : index
    %c0_8 = arith.constant 0 : index
    %5 = vector.load %arg7[%c0_7, %c0_8] : memref<104x256xf32, #tpu.memory_space<vmem>>, vector<8x256xf32>
    tpu.vector_store %arg7[%c0_7, %c0_8], %4 {strides = array<i32>} : memref<104x256xf32, #tpu.memory_space<vmem>>, vector<8x256xf32>,
    %c0_9 = arith.constant 0 : index
    %c65 = arith.constant 65 : index
    %6 = vector.load %arg6[%c0_9, %c65] : memref<8x512xf32, #tpu.memory_space<vmem>>, vector<8x256xf32>
    %c8 = arith.constant 8 : index
    %c0_10 = arith.constant 0 : index
    %7 = vector.load %arg7[%c8, %c0_10] : memref<104x256xf32, #tpu.memory_space<vmem>>, vector<8x256xf32>
    tpu.vector_store %arg7[%c8, %c0_10], %6 {strides = array<i32>} : memref<104x256xf32, #tpu.memory_space<vmem>>, vector<8x256xf32>,
    %c0_11 = arith.constant 0 : index
    %c67 = arith.constant 67 : index
    %8 = vector.load %arg6[%c0_11, %c67] : memref<8x512xf32, #tpu.memory_space<vmem>>, vector<8x256xf32>
    %c16 = arith.constant 16 : index
    %c0_12 = arith.constant 0 : index
    %9 = vector.load %arg7[%c16, %c0_12] : memref<104x256xf32, #tpu.memory_space<vmem>>, vector<8x256xf32>
    tpu.vector_store %arg7[%c16, %c0_12], %8 {strides = array<i32>} : memref<104x256xf32, #tpu.memory_space<vmem>>, vector<8x256xf32>,
    %c0_13 = arith.constant 0 : index
    %c64 = arith.constant 64 : index
    %10 = vector.load %arg6[%c0_13, %c64] : memref<8x512xf32, #tpu.memory_space<vmem>>, vector<8x256xf32>
    %c24 = arith.constant 24 : index
    %c0_14 = arith.constant 0 : index
    %11 = vector.load %arg7[%c24, %c0_14] : memref<104x256xf32, #tpu.memory_space<vmem>>, vector<8x256xf32>
    tpu.vector_store %arg7[%c24, %c0_14], %10 {strides = array<i32>} : memref<104x256xf32, #tpu.memory_space<vmem>>, vector<8x256xf32>,
    %c0_15 = arith.constant 0 : index
    %c68 = arith.constant 68 : index
    %12 = vector.load %arg6[%c0_15, %c68] : memref<8x512xf32, #tpu.memory_space<vmem>>, vector<8x256xf32>
    %c32 = arith.constant 32 : index
    %c0_16 = arith.constant 0 : index
    %13 = vector.load %arg7[%c32, %c0_16] : memref<104x256xf32, #tpu.memory_space<vmem>>, vector<8x256xf32>
    tpu.vector_store %arg7[%c32, %c0_16], %12 {strides = array<i32>} : memref<104x256xf32, #tpu.memory_space<vmem>>, vector<8x256xf32>,
    %c0_17 = arith.constant 0 : index
    %c63 = arith.constant 63 : index
    %14 = vector.load %arg6[%c0_17, %c63] : memref<8x512xf32, #tpu.memory_space<vmem>>, vector<8x256xf32>
    %c40 = arith.constant 40 : index
    %c0_18 = arith.constant 0 : index
    %15 = vector.load %arg7[%c40, %c0_18] : memref<104x256xf32, #tpu.memory_space<vmem>>, vector<8x256xf32>
    tpu.vector_store %arg7[%c40, %c0_18], %14 {strides = array<i32>} : memref<104x256xf32, #tpu.memory_space<vmem>>, vector<8x256xf32>,
    %c0_19 = arith.constant 0 : index
    %c69 = arith.constant 69 : index
    %16 = vector.load %arg6[%c0_19, %c69] : memref<8x512xf32, #tpu.memory_space<vmem>>, vector<8x256xf32>
    %c48 = arith.constant 48 : index
    %c0_20 = arith.constant 0 : index
    %17 = vector.load %arg7[%c48, %c0_20] : memref<104x256xf32, #tpu.memory_space<vmem>>, vector<8x256xf32>
    tpu.vector_store %arg7[%c48, %c0_20], %16 {strides = array<i32>} : memref<104x256xf32, #tpu.memory_space<vmem>>, vector<8x256xf32>,
    %c0_21 = arith.constant 0 : index
    %c44 = arith.constant 44 : index
    %18 = vector.load %arg6[%c0_21, %c44] : memref<8x512xf32, #tpu.memory_space<vmem>>, vector<8x256xf32>
    %c56 = arith.constant 56 : index
    %c0_22 = arith.constant 0 : index
    %19 = vector.load %arg7[%c56, %c0_22] : memref<104x256xf32, #tpu.memory_space<vmem>>, vector<8x256xf32>
    tpu.vector_store %arg7[%c56, %c0_22], %18 {strides = array<i32>} : memref<104x256xf32, #tpu.memory_space<vmem>>, vector<8x256xf32>,
    %c0_23 = arith.constant 0 : index
    %c88 = arith.constant 88 : index
    %20 = vector.load %arg6[%c0_23, %c88] : memref<8x512xf32, #tpu.memory_space<vmem>>, vector<8x256xf32>
    %c64_24 = arith.constant 64 : index
    %c0_25 = arith.constant 0 : index
    %21 = vector.load %arg7[%c64_24, %c0_25] : memref<104x256xf32, #tpu.memory_space<vmem>>, vector<8x256xf32>
    tpu.vector_store %arg7[%c64_24, %c0_25], %20 {strides = array<i32>} : memref<104x256xf32, #tpu.memory_space<vmem>>, vector<8x256xf32>,
    %c0_26 = arith.constant 0 : index
    %c22 = arith.constant 22 : index
    %22 = vector.load %arg6[%c0_26, %c22] : memref<8x512xf32, #tpu.memory_space<vmem>>, vector<8x256xf32>
    %c72 = arith.constant 72 : index
    %c0_27 = arith.constant 0 : index
    %23 = vector.load %arg7[%c72, %c0_27] : memref<104x256xf32, #tpu.memory_space<vmem>>, vector<8x256xf32>
    tpu.vector_store %arg7[%c72, %c0_27], %22 {strides = array<i32>} : memref<104x256xf32, #tpu.memory_space<vmem>>, vector<8x256xf32>,
    %c0_28 = arith.constant 0 : index
    %c110 = arith.constant 110 : index
    %24 = vector.load %arg6[%c0_28, %c110] : memref<8x512xf32, #tpu.memory_space<vmem>>, vector<8x256xf32>
    %c80 = arith.constant 80 : index
    %c0_29 = arith.constant 0 : index
    %25 = vector.load %arg7[%c80, %c0_29] : memref<104x256xf32, #tpu.memory_space<vmem>>, vector<8x256xf32>
    tpu.vector_store %arg7[%c80, %c0_29], %24 {strides = array<i32>} : memref<104x256xf32, #tpu.memory_space<vmem>>, vector<8x256xf32>,
    %c0_30 = arith.constant 0 : index
    %c0_31 = arith.constant 0 : index
    %26 = vector.load %arg6[%c0_30, %c0_31] : memref<8x512xf32, #tpu.memory_space<vmem>>, vector<8x256xf32>
    %c88_32 = arith.constant 88 : index
    %c0_33 = arith.constant 0 : index
    %27 = vector.load %arg7[%c88_32, %c0_33] : memref<104x256xf32, #tpu.memory_space<vmem>>, vector<8x256xf32>
    tpu.vector_store %arg7[%c88_32, %c0_33], %26 {strides = array<i32>} : memref<104x256xf32, #tpu.memory_space<vmem>>, vector<8x256xf32>,
    %c0_34 = arith.constant 0 : index
    %c132 = arith.constant 132 : index
    %28 = vector.load %arg6[%c0_34, %c132] : memref<8x512xf32, #tpu.memory_space<vmem>>, vector<8x256xf32>
    %c96 = arith.constant 96 : index
    %c0_35 = arith.constant 0 : index
    %29 = vector.load %arg7[%c96, %c0_35] : memref<104x256xf32, #tpu.memory_space<vmem>>, vector<8x256xf32>
    tpu.vector_store %arg7[%c96, %c0_35], %28 {strides = array<i32>} : memref<104x256xf32, #tpu.memory_space<vmem>>, vector<8x256xf32>,
    %c0_36 = arith.constant 0 : index
    %c0_37 = arith.constant 0 : index
    %30 = vector.load %arg3[%c0_36, %c0_37] : memref<8x104xf32, #tpu.memory_space<vmem>>, vector<8x104xf32>
    %c0_38 = arith.constant 0 : index
    %c0_39 = arith.constant 0 : index
    %31 = vector.load %arg7[%c0_38, %c0_39] : memref<104x256xf32, #tpu.memory_space<vmem>>, vector<104x256xf32>
    %cst = arith.constant dense<0.000000e+00> : vector<8x256xf32>
    %32 = tpu.matmul %30, %31, %cst {dimension_numbers = #tpu.dot_dimension_numbers<[1], [0], [0], [1], [0, 0, 1, 1], [], []>} : vector<8x104xf32>, vector<104x256xf32>, vector<8x256xf32> -> vector<8x256xf32>
    %c0_40 = arith.constant 0 : index
    %c0_41 = arith.constant 0 : index
    %33 = vector.load %arg4[%c0_40, %c0_41] : memref<8x1xf32, #tpu.memory_space<vmem>>, vector<8x1xf32>
    %34 = vector.broadcast %33 : vector<8x1xf32> to vector<8x256xf32>
    %35 = arith.addf %32, %34 : vector<8x256xf32>
    %c0_42 = arith.constant 0 : index
    %c0_43 = arith.constant 0 : index
    %36 = vector.load %arg5[%c0_42, %c0_43] : memref<8x256xf32, #tpu.memory_space<vmem>>, vector<8x256xf32>
    tpu.vector_store %arg5[%c0_42, %c0_43], %35 {strides = array<i32>} : memref<8x256xf32, #tpu.memory_space<vmem>>, vector<8x256xf32>,
    return
  }
  func.func @transform_0(%arg0: i32) -> (i32, i32) {
    %c0_i32 = arith.constant 0 : i32
    %c0_i32_0 = arith.constant 0 : i32
    return %c0_i32, %arg0 : i32, i32
  }
  func.func @transform_1(%arg0: i32) -> (i32, i32) {
    %c1_i32 = arith.constant 1 : i32
    %0 = arith.addi %arg0, %c1_i32 : i32
    %c4_i32 = arith.constant 4 : i32
    %1 = arith.minsi %0, %c4_i32 : i32
    %c0_i32 = arith.constant 0 : i32
    %c0_i32_0 = arith.constant 0 : i32
    return %c0_i32, %1 : i32, i32
  }
  func.func @transform_2(%arg0: i32) -> (i32, i32) {
    %c0_i32 = arith.constant 0 : i32
    %c0_i32_0 = arith.constant 0 : i32
    %c0_i32_1 = arith.constant 0 : i32
    return %c0_i32, %c0_i32_0 : i32, i32
  }
  func.func @transform_3(%arg0: i32) -> (i32, i32) {
    %c0_i32 = arith.constant 0 : i32
    %c0_i32_0 = arith.constant 0 : i32
    %c0_i32_1 = arith.constant 0 : i32
    return %c0_i32, %c0_i32_0 : i32, i32
  }
  func.func @transform_4(%arg0: i32) -> (i32, i32) {
    %c0_i32 = arith.constant 0 : i32
    %c0_i32_0 = arith.constant 0 : i32
    return %c0_i32, %arg0 : i32, i32
  }
}

</mosaic_0001>

<llo_original>
// kernel: tpu_custom_call.1
$region0: #{tpu_custom_call.1}
  #allocation0 [shape = 'u32[]', space=smem, size = 0x4, offset = 0x4, fixed_abs, tag = 'smem constant byte address 0x4 - core index']
  #allocation1 [shape = 'u32[144,128]{1,0:T(1,128)}', space=vmem, size = 0x12000, scoped, tag = 'internal scratch']
  #allocation2 [shape = 'f32[8,512]{1,0:T(8,128)}', space=vmem, size = 0x4000, scoped, tag = 'scratch operand']
  #allocation3 [shape = 'f32[104,256]{1,0:T(8,128)}', space=vmem, size = 0x1a000, scoped, tag = 'scratch operand']
  %s0 = inlined_call_operand.hbm [shape: f32[8,1100], index: 0, kind: input, shape index: {}]
  %s1 = inlined_call_operand.hbm [shape: f32[8,1100], index: 1, kind: input, shape index: {}]
  %s2 = inlined_call_operand.vmem [shape: f32[8,104], index: 2, kind: input, shape index: {}]
  %s3 = inlined_call_operand.vmem [shape: f32[8,1], index: 3, kind: input, shape index: {}]
  %s4 = inlined_call_operand.hbm [shape: f32[8,968], index: 4, kind: output, shape index: {}]
  %s5 = sld [smem:[#allocation0]]
  $region57: #{tpu_custom_call.1} parent=0
    _
  %s7 = ssub.s32 1, %s5
  %s8 = scalar_select 0, %s7, %s5
  $region1: #{tpu_custom_call.1} parent=0
    #allocation4 [shape = 'u8[16384]{0}', space=vmem, size = 0x4000, scoped, tag = 'input window, operand 0']
    #allocation5 [shape = 's32[2]{0}', space=sflag, size = 0x8, scoped, tag = 'scoped memory for tpu_custom_call.1']
    #allocation6 [shape = 's32[2]{0}', space=sflag, size = 0x8, scoped, tag = 'scoped memory for tpu_custom_call.1']
    #allocation7 [shape = 'u8[16384]{0}', space=vmem, size = 0x4000, scoped, tag = 'input window, operand 1']
    #allocation8 [shape = 's32[2]{0}', space=sflag, size = 0x8, scoped, tag = 'scoped memory for tpu_custom_call.1']
    #allocation9 [shape = 'u8[16384]{0}', space=vmem, size = 0x4000, scoped, tag = 'output window, operand 0']
    %9 = vsyncpa [#allocation5], 0
    %s10 = scalar_lea.sflag [#allocation5], 1
    %11 = vsyncpa %s10, 0
    %12 = vsyncpa [#allocation8], 0
    %s13 = scalar_lea.sflag [#allocation8], 1
    %14 = vsyncpa %s13, 0
    %15 = vsyncpa [#allocation6], 0
    %s16 = scalar_lea.sflag [#allocation6], 1
    %17 = vsyncpa %s16, 0
    loop: start=0, step=1, limit=6
    $region2: #{tpu_custom_call.1} parent=1 // loop_pre_header
      _
    $region3: #{tpu_custom_call.1} parent=1 // loop_header
      %s19 = sphi 0, %s23
      %p20 = scmp.ge.s32.totalorder %s19, 6
      %s29 = sphi 0, %s31
      %s32 = sphi 0, %s29
      %s33 = sphi 0, %s32
      %s49 = sphi 0, %s33
      %s61 = sphi 0, %s63
      %s64 = sphi 0, %s61
      %s65 = sphi 0, %s64
      %s81 = sphi 0, %s65
      %s85 = sphi 0, %s85
      %s87 = sphi 0, %s85
      %s88 = sphi 0, %s87
      %s102 = sphi 0, %s88
      %s106 = sphi 0, %s106
      %s108 = sphi 0, %s106
      %s109 = sphi 0, %s108
      %s123 = sphi 0, %s109
      %s129 = sphi 0, %s131
      %s132 = sphi 0, %s129
      %s133 = sphi 0, %s132
      %s149 = sphi 0, %s133
    $region4: #{tpu_custom_call.1} parent=1 // loop_header_branch
      %22 = sbr.rel (%p20) target = $region8
    $region5: #{tpu_custom_call.1} parent=1 // loop_body
      %s24 = ssub.s32 %s19, 1
      %s25 = ssub.s32 %s19, 2
      %s26 = sadd.s32 %s19, 1
      %s27 = ssub.s32 %s19, %s26
      %p28 = scmp.eq.s32.totalorder %s27, 0
      %s30 = sadd.s32 %s29, 1
      %s31 = scalar_select %p28, %s29, %s30
      %p34 = pneg %p28
      %p35 = scmp.eq.s32.totalorder %s19, 3
      %p36 = por %p34, %p35
      %p37 = scmp.ne.s32.totalorder %s29, %s32
      %p38 = scmp.eq.s32.totalorder %s19, 0
      %p39 = por %p37, %p38
      %p40 = scmp.ne.s32.totalorder %s29, %s32
      %p41 = scmp.eq.s32.totalorder %s24, 3
      %p42 = por %p40, %p41
      %p43 = scmp.ne.s32.totalorder %s32, %s33
      %p44 = scmp.eq.s32.totalorder %s24, 0
      %p45 = por %p43, %p44
      %p46 = scmp.ne.s32.totalorder %s32, %s33
      %p47 = scmp.eq.s32.totalorder %s25, 3
      %p48 = por %p46, %p47
      %p50 = scmp.ne.s32.totalorder %s33, %s49
      %p51 = scmp.eq.s32.totalorder %s25, 0
      %p52 = por %p50, %p51
      %s53 = sadd.s32 %s19, 1
      %p54 = scmp.lt.s32.totalorder %s53, 4
      %s55 = scalar_select %p54, %s53, 4
      %s56 = sadd.s32 %s26, 1
      %p57 = scmp.lt.s32.totalorder %s56, 4
      %s58 = scalar_select %p57, %s56, 4
      %s59 = ssub.s32 %s55, %s58
      %p60 = scmp.eq.s32.totalorder %s59, 0
      %s62 = sadd.s32 %s61, 1
      %s63 = scalar_select %p60, %s61, %s62
      %p66 = pneg %p60
      %p67 = scmp.eq.s32.totalorder %s19, 3
      %p68 = por %p66, %p67
      %p69 = scmp.ne.s32.totalorder %s61, %s64
      %p70 = scmp.eq.s32.totalorder %s19, 0
      %p71 = por %p69, %p70
      %p72 = scmp.ne.s32.totalorder %s61, %s64
      %p73 = scmp.eq.s32.totalorder %s24, 3
      %p74 = por %p72, %p73
      %p75 = scmp.ne.s32.totalorder %s64, %s65
      %p76 = scmp.eq.s32.totalorder %s24, 0
      %p77 = por %p75, %p76
      %p78 = scmp.ne.s32.totalorder %s64, %s65
      %p79 = scmp.eq.s32.totalorder %s25, 3
      %p80 = por %p78, %p79
      %p82 = scmp.ne.s32.totalorder %s65, %s81
      %p83 = scmp.eq.s32.totalorder %s25, 0
      %p84 = por %p82, %p83
      %s86 = sadd.s32 %s85, 1
      %p89 = scmp.eq.s32.totalorder %s19, 3
      %p90 = scmp.ne.s32.totalorder %s85, %s87
      %p91 = scmp.eq.s32.totalorder %s19, 0
      %p92 = por %p90, %p91
      %p93 = scmp.ne.s32.totalorder %s85, %s87
      %p94 = scmp.eq.s32.totalorder %s24, 3
      %p95 = por %p93, %p94
      %p96 = scmp.ne.s32.totalorder %s87, %s88
      %p97 = scmp.eq.s32.totalorder %s24, 0
      %p98 = por %p96, %p97
      %p99 = scmp.ne.s32.totalorder %s87, %s88
      %p100 = scmp.eq.s32.totalorder %s25, 3
      %p101 = por %p99, %p100
      %p103 = scmp.ne.s32.totalorder %s88, %s102
      %p104 = scmp.eq.s32.totalorder %s25, 0
      %p105 = por %p103, %p104
      %s107 = sadd.s32 %s106, 1
      %p110 = scmp.eq.s32.totalorder %s19, 3
      %p111 = scmp.ne.s32.totalorder %s106, %s108
      %p112 = scmp.eq.s32.totalorder %s19, 0
      %p113 = por %p111, %p112
      %p114 = scmp.ne.s32.totalorder %s106, %s108
      %p115 = scmp.eq.s32.totalorder %s24, 3
      %p116 = por %p114, %p115
      %p117 = scmp.ne.s32.totalorder %s108, %s109
      %p118 = scmp.eq.s32.totalorder %s24, 0
      %p119 = por %p117, %p118
      %p120 = scmp.ne.s32.totalorder %s108, %s109
      %p121 = scmp.eq.s32.totalorder %s25, 3
      %p122 = por %p120, %p121
      %p124 = scmp.ne.s32.totalorder %s109, %s123
      %p125 = scmp.eq.s32.totalorder %s25, 0
      %p126 = por %p124, %p125
      %s127 = ssub.s32 %s19, %s26
      %p128 = scmp.eq.s32.totalorder %s127, 0
      %s130 = sadd.s32 %s129, 1
      %s131 = scalar_select %p128, %s129, %s130
      %p134 = pneg %p128
      %p135 = scmp.eq.s32.totalorder %s19, 3
      %p136 = por %p134, %p135
      %p137 = scmp.ne.s32.totalorder %s129, %s132
      %p138 = scmp.eq.s32.totalorder %s19, 0
      %p139 = por %p137, %p138
      %p140 = scmp.ne.s32.totalorder %s129, %s132
      %p141 = scmp.eq.s32.totalorder %s24, 3
      %p142 = por %p140, %p141
      %p143 = scmp.ne.s32.totalorder %s132, %s133
      %p144 = scmp.eq.s32.totalorder %s24, 0
      %p145 = por %p143, %p144
      %p146 = scmp.ne.s32.totalorder %s132, %s133
      %p147 = scmp.eq.s32.totalorder %s25, 3
      %p148 = por %p146, %p147
      %p150 = scmp.ne.s32.totalorder %s133, %s149
      %p151 = scmp.eq.s32.totalorder %s25, 0
      %p152 = por %p150, %p151
      %p153 = scmp.le.s32.totalorder 1, %s19
      %p154 = scmp.lt.s32.totalorder %s19, 5
      %p155 = pnand %p153, %p154
      %p156 = pneg %p155
      // Predicated region
      $region9: #{tpu_custom_call.1} parent=5 // pred_check
        _
      $region10: #{tpu_custom_call.1} parent=5 // pred_check_branch
        %158 = sbr.rel (%p155) target = $region12
      $region11: #{tpu_custom_call.1} parent=5 // pred_region
        %s159 = ssub.s32 %s19, 1
        // Predicated region
        $region13: #{tpu_custom_call.1} parent=11 // pred_check
          %p160 = pneg %p98
        $region14: #{tpu_custom_call.1} parent=11 // pred_check_branch
          %162 = sbr.rel (%p160) target = $region16
        $region15: #{tpu_custom_call.1} parent=11 // pred_region
          _
        $region16: #{tpu_custom_call.1} parent=11 // pred_fallthru
          _
        // Predicated region
        $region17: #{tpu_custom_call.1} parent=11 // pred_check
          %p163 = pneg %p119
        $region18: #{tpu_custom_call.1} parent=11 // pred_check_branch
          %165 = sbr.rel (%p163) target = $region20
        $region19: #{tpu_custom_call.1} parent=11 // pred_region
          _
        $region20: #{tpu_custom_call.1} parent=11 // pred_fallthru
          _
      $region12: #{tpu_custom_call.1} parent=5 // pred_fallthru
        _
      %p166 = scmp.lt.s32.totalorder %s19, 4
      // Predicated region
      $region21: #{tpu_custom_call.1} parent=5 // pred_check
        %p167 = pneg %p166
      $region22: #{tpu_custom_call.1} parent=5 // pred_check_branch
        %169 = sbr.rel (%p167) target = $region24
      $region23: #{tpu_custom_call.1} parent=5 // pred_region
        // Predicated region
        $region25: #{tpu_custom_call.1} parent=23 // pred_check
          %p170 = pneg %p39
        $region26: #{tpu_custom_call.1} parent=23 // pred_check_branch
          %172 = sbr.rel (%p170) target = $region28
        $region27: #{tpu_custom_call.1} parent=23 // pred_region
          %s173 = sand.u32 %s29, 1
          %s174 = scalar_lea.sflag [#allocation5], %s173
          %s175 = sand.u32 %s29, 1
          %s176 = smul.addr %s175, 16
          %s177 = scalar_lea.vmem [#allocation4], %s176
          %s178 = smul.u32 2, %s19
          %s179 = ssub.s32 9, %s178
          %p180 = scmp.lt.s32.totalorder %s179, 2
          %s181 = scalar_select %p180, %s179, 2
          %s182 = smul.u32 128, %s181
          %s184 = ssub.s32 256, %s182
          %185 = vsyncadd %s174, %s184
          %p186 = scmp.ne.s32.totalorder 0, %s182
          %s187 = smul.addr %s178, 128
          %s188 = scalar_lea.hbm %s0, %s187
          %s189 = smul.u32 %s181, 8
          %s190 = sshll.u32 %s189, 4
          %s191 = sshll.u32 %s177, 4
          %s192 = int_to_ptr.vmem [resolvable:$true] %s191
          %194 = dma.hbm_to_vmem [thread:$0]  (%p186), %s188, %s190, %s192, %s174
        $region28: #{tpu_custom_call.1} parent=23 // pred_fallthru
          _
        // Predicated region
        $region29: #{tpu_custom_call.1} parent=23 // pred_check
          %p195 = pneg %p71
        $region30: #{tpu_custom_call.1} parent=23 // pred_check_branch
          %197 = sbr.rel (%p195) target = $region32
        $region31: #{tpu_custom_call.1} parent=23 // pred_region
          %s198 = sand.u32 %s61, 1
          %s199 = scalar_lea.sflag [#allocation8], %s198
          %s200 = sand.u32 %s61, 1
          %s201 = smul.addr %s200, 16
          %s202 = scalar_lea.vmem [#allocation7], %s201
          %s203 = sadd.s32 %s19, 1
          %p204 = scmp.lt.s32.totalorder %s203, 4
          %s205 = scalar_select %p204, %s203, 4
          %s206 = smul.u32 2, %s205
          %s207 = ssub.s32 9, %s206
          %p208 = scmp.lt.s32.totalorder %s207, 2
          %s209 = scalar_select %p208, %s207, 2
          %s210 = smul.u32 128, %s209
          %s212 = ssub.s32 256, %s210
          %213 = vsyncadd %s199, %s212
          %p214 = scmp.ne.s32.totalorder 0, %s210
          %s215 = smul.addr %s206, 128
          %s216 = scalar_lea.hbm %s1, %s215
          %s217 = smul.u32 %s209, 8
          %s218 = sshll.u32 %s217, 4
          %s219 = sshll.u32 %s202, 4
          %s220 = int_to_ptr.vmem [resolvable:$true] %s219
          %222 = dma.hbm_to_vmem [thread:$0]  (%p214), %s216, %s218, %s220, %s199
        $region32: #{tpu_custom_call.1} parent=23 // pred_fallthru
          _
      $region24: #{tpu_custom_call.1} parent=5 // pred_fallthru
        _
      %p223 = scmp.le.s32.totalorder 1, %s19
      %p224 = scmp.lt.s32.totalorder %s19, 5
      %p225 = pnand %p223, %p224
      %p226 = pneg %p225
      // Predicated region
      $region33: #{tpu_custom_call.1} parent=5 // pred_check
        _
      $region34: #{tpu_custom_call.1} parent=5 // pred_check_branch
        %228 = sbr.rel (%p225) target = $region36
      $region35: #{tpu_custom_call.1} parent=5 // pred_region
        %s229 = ssub.s32 %s19, 1
        %s230 = sand.u32 %s32, 1
        %s231 = scalar_lea.sflag [#allocation5], %s230
        %s232 = sand.u32 %s32, 1
        %s233 = smul.addr %s232, 16
        %s234 = scalar_lea.vmem [#allocation4], %s233
        // Predicated region
        $region37: #{tpu_custom_call.1} parent=35 // pred_check
          %p235 = pneg %p45
        $region38: #{tpu_custom_call.1} parent=35 // pred_check_branch
          %237 = sbr.rel (%p235) target = $region40
        $region39: #{tpu_custom_call.1} parent=35 // pred_region
          %238 = dma.done %s231, 256
        $region40: #{tpu_custom_call.1} parent=35 // pred_fallthru
          _
        %s239 = sand.u32 %s64, 1
        %s240 = scalar_lea.sflag [#allocation8], %s239
        %s241 = sand.u32 %s64, 1
        %s242 = smul.addr %s241, 16
        %s243 = scalar_lea.vmem [#allocation7], %s242
        // Predicated region
        $region41: #{tpu_custom_call.1} parent=35 // pred_check
          %p244 = pneg %p77
        $region42: #{tpu_custom_call.1} parent=35 // pred_check_branch
          %246 = sbr.rel (%p244) target = $region44
        $region43: #{tpu_custom_call.1} parent=35 // pred_region
          %247 = dma.done %s240, 256
        $region44: #{tpu_custom_call.1} parent=35 // pred_fallthru
          _
        %s248 = sand.u32 %s32, 1
        %s249 = scalar_lea.sflag [#allocation5], %s248
        %s250 = sand.u32 %s32, 1
        %s251 = smul.addr %s250, 16
        %s252 = scalar_lea.vmem [#allocation4], %s251
        %p253 = pneg %p45
        %p254 = pneg %p42
        %s255 = sand.u32 %s64, 1
        %s256 = scalar_lea.sflag [#allocation8], %s255
        %s257 = sand.u32 %s64, 1
        %s258 = smul.addr %s257, 16
        %s259 = scalar_lea.vmem [#allocation7], %s258
        %p260 = pneg %p77
        %p261 = pneg %p74
        %p262 = pneg %p98
        %p263 = pneg %p95
        %p264 = pneg %p119
        %p265 = pneg %p116
        %p266 = pneg %p145
        %p267 = pneg %p142
        %s268 = sand.u32 %s132, 1
        %s269 = scalar_lea.sflag [#allocation6], %s268
        %s270 = sand.u32 %s132, 1
        %s271 = smul.addr %s270, 16
        %s272 = scalar_lea.vmem [#allocation9], %s271
        %s273 = smul.u32 2, %s24
        %s274 = ssub.s32 9, %s273
        %p275 = scmp.lt.s32.totalorder %s274, 2
        %s276 = scalar_select %p275, %s274, 2
        %s277 = smul.u32 128, %s276
        %s278 = sadd.s32 %s24, 1
        %p279 = scmp.lt.s32.totalorder %s278, 4
        %s280 = scalar_select %p279, %s278, 4
        %s281 = smul.u32 2, %s280
        %s282 = ssub.s32 9, %s281
        %p283 = scmp.lt.s32.totalorder %s282, 2
        %s284 = scalar_select %p283, %s282, 2
        %s285 = smul.u32 128, %s284
        %s286 = smul.u32 2, %s24
        %v287 = vld [vmem:[%s234] sm:$0xff]
        %v288 = vld [vmem:[%s234 + $0x8] sm:$0xff]
        %289 = vst [vmem:[#allocation2] sm:$0xff] %v287
        %290 = vst [vmem:[#allocation2 + $0x8] sm:$0xff] %v288
        %v291 = vld [vmem:[%s243] sm:$0xff]
        %v292 = vld [vmem:[%s243 + $0x8] sm:$0xff]
        %293 = vst [vmem:[#allocation2 + $0x10] sm:$0xff] %v291
        %294 = vst [vmem:[#allocation2 + $0x18] sm:$0xff] %v292
        %v295 = vld [vmem:[#allocation2] sm:$0xff]
        %v296 = vld [vmem:[#allocation2 + $0x8] sm:$0xff]
        %v297 = vld [vmem:[#allocation2 + $0x10] sm:$0xff]
        %301 = vrot.lane.b32.xlu0 %v295, 62
        %v302 = vpop.permute.xlu0 %301
        %303 = vrot.lane.b32.xlu0 %v296, 62
        %v304 = vpop.permute.xlu0 %303
        %305 = vrot.lane.b32.xlu0 %v297, 62
        %v306 = vpop.permute.xlu0 %305
        %vm307 = vcmask 506880
        %v308 = vsel %vm307, %v302, %v304
        %v309 = vsel %vm307, %v304, %v306
        %312 = vst [vmem:[#allocation3] sm:$0xff] %v308
        %313 = vst [vmem:[#allocation3 + $0x8] sm:$0xff] %v309
        %v314 = vld [vmem:[#allocation2] sm:$0xff]
        %v315 = vld [vmem:[#allocation2 + $0x8] sm:$0xff]
        %v316 = vld [vmem:[#allocation2 + $0x10] sm:$0xff]
        %320 = vrot.lane.b32.xlu0 %v314, 63
        %v321 = vpop.permute.xlu0 %320
        %322 = vrot.lane.b32.xlu0 %v315, 63
        %v323 = vpop.permute.xlu0 %322
        %324 = vrot.lane.b32.xlu0 %v316, 63
        %v325 = vpop.permute.xlu0 %324
        %vm326 = vcmask 515072
        %v327 = vsel %vm326, %v321, %v323
        %v328 = vsel %vm326, %v323, %v325
        %331 = vst [vmem:[#allocation3 + $0x10] sm:$0xff] %v327
        %332 = vst [vmem:[#allocation3 + $0x18] sm:$0xff] %v328
        %v333 = vld [vmem:[#allocation2] sm:$0xff]
        %v334 = vld [vmem:[#allocation2 + $0x8] sm:$0xff]
        %v335 = vld [vmem:[#allocation2 + $0x10] sm:$0xff]
        %339 = vrot.lane.b32.xlu0 %v333, 61
        %v340 = vpop.permute.xlu0 %339
        %341 = vrot.lane.b32.xlu0 %v334, 61
        %v342 = vpop.permute.xlu0 %341
        %343 = vrot.lane.b32.xlu0 %v335, 61
        %v344 = vpop.permute.xlu0 %343
        %vm345 = vcmask 498688
        %v346 = vsel %vm345, %v340, %v342
        %v347 = vsel %vm345, %v342, %v344
        %350 = vst [vmem:[#allocation3 + $0x20] sm:$0xff] %v346
        %351 = vst [vmem:[#allocation3 + $0x28] sm:$0xff] %v347
        %v352 = vld [vmem:[#allocation2] sm:$0xff]
        %v353 = vld [vmem:[#allocation2 + $0x8] sm:$0xff]
        %v354 = vld [vmem:[#allocation2 + $0x10] sm:$0xff]
        %358 = vrot.lane.b32.xlu0 %v352, 64
        %v359 = vpop.permute.xlu0 %358
        %360 = vrot.lane.b32.xlu0 %v353, 64
        %v361 = vpop.permute.xlu0 %360
        %362 = vrot.lane.b32.xlu0 %v354, 64
        %v363 = vpop.permute.xlu0 %362
        %vm364 = vcmask 523264
        %v365 = vsel %vm364, %v359, %v361
        %v366 = vsel %vm364, %v361, %v363
        %369 = vst [vmem:[#allocation3 + $0x30] sm:$0xff] %v365
        %370 = vst [vmem:[#allocation3 + $0x38] sm:$0xff] %v366
        %v371 = vld [vmem:[#allocation2] sm:$0xff]
        %v372 = vld [vmem:[#allocation2 + $0x8] sm:$0xff]
        %v373 = vld [vmem:[#allocation2 + $0x10] sm:$0xff]
        %377 = vrot.lane.b32.xlu0 %v371, 60
        %v378 = vpop.permute.xlu0 %377
        %379 = vrot.lane.b32.xlu0 %v372, 60
        %v380 = vpop.permute.xlu0 %379
        %381 = vrot.lane.b32.xlu0 %v373, 60
        %v382 = vpop.permute.xlu0 %381
        %vm383 = vcmask 490496
        %v384 = vsel %vm383, %v378, %v380
        %v385 = vsel %vm383, %v380, %v382
        %388 = vst [vmem:[#allocation3 + $0x40] sm:$0xff] %v384
        %389 = vst [vmem:[#allocation3 + $0x48] sm:$0xff] %v385
        %v390 = vld [vmem:[#allocation2] sm:$0xff]
        %v391 = vld [vmem:[#allocation2 + $0x8] sm:$0xff]
        %v392 = vld [vmem:[#allocation2 + $0x10] sm:$0xff]
        %396 = vrot.lane.b32.xlu0 %v390, 65
        %v397 = vpop.permute.xlu0 %396
        %398 = vrot.lane.b32.xlu0 %v391, 65
        %v399 = vpop.permute.xlu0 %398
        %400 = vrot.lane.b32.xlu0 %v392, 65
        %v401 = vpop.permute.xlu0 %400
        %vm402 = vcmask 531456
        %v403 = vsel %vm402, %v397, %v399
        %v404 = vsel %vm402, %v399, %v401
        %407 = vst [vmem:[#allocation3 + $0x50] sm:$0xff] %v403
        %408 = vst [vmem:[#allocation3 + $0x58] sm:$0xff] %v404
        %v409 = vld [vmem:[#allocation2] sm:$0xff]
        %v410 = vld [vmem:[#allocation2 + $0x8] sm:$0xff]
        %v411 = vld [vmem:[#allocation2 + $0x10] sm:$0xff]
        %415 = vrot.lane.b32.xlu0 %v409, 59
        %v416 = vpop.permute.xlu0 %415
        %417 = vrot.lane.b32.xlu0 %v410, 59
        %v418 = vpop.permute.xlu0 %417
        %419 = vrot.lane.b32.xlu0 %v411, 59
        %v420 = vpop.permute.xlu0 %419
        %vm421 = vcmask 482304
        %v422 = vsel %vm421, %v416, %v418
        %v423 = vsel %vm421, %v418, %v420
        %426 = vst [vmem:[#allocation3 + $0x60] sm:$0xff] %v422
        %427 = vst [vmem:[#allocation3 + $0x68] sm:$0xff] %v423
        %v428 = vld [vmem:[#allocation2] sm:$0xff]
        %v429 = vld [vmem:[#allocation2 + $0x8] sm:$0xff]
        %v430 = vld [vmem:[#allocation2 + $0x10] sm:$0xff]
        %434 = vrot.lane.b32.xlu0 %v428, 84
        %v435 = vpop.permute.xlu0 %434
        %436 = vrot.lane.b32.xlu0 %v429, 84
        %v437 = vpop.permute.xlu0 %436
        %438 = vrot.lane.b32.xlu0 %v430, 84
        %v439 = vpop.permute.xlu0 %438
        %vm440 = vcmask 687104
        %v441 = vsel %vm440, %v435, %v437
        %v442 = vsel %vm440, %v437, %v439
        %445 = vst [vmem:[#allocation3 + $0x70] sm:$0xff] %v441
        %446 = vst [vmem:[#allocation3 + $0x78] sm:$0xff] %v442
        %v447 = vld [vmem:[#allocation2] sm:$0xff]
        %v448 = vld [vmem:[#allocation2 + $0x8] sm:$0xff]
        %v449 = vld [vmem:[#allocation2 + $0x10] sm:$0xff]
        %453 = vrot.lane.b32.xlu0 %v447, 40
        %v454 = vpop.permute.xlu0 %453
        %455 = vrot.lane.b32.xlu0 %v448, 40
        %v456 = vpop.permute.xlu0 %455
        %457 = vrot.lane.b32.xlu0 %v449, 40
        %v458 = vpop.permute.xlu0 %457
        %vm459 = vcmask 326656
        %v460 = vsel %vm459, %v454, %v456
        %v461 = vsel %vm459, %v456, %v458
        %464 = vst [vmem:[#allocation3 + $0x80] sm:$0xff] %v460
        %465 = vst [vmem:[#allocation3 + $0x88] sm:$0xff] %v461
        %v466 = vld [vmem:[#allocation2] sm:$0xff]
        %v467 = vld [vmem:[#allocation2 + $0x8] sm:$0xff]
        %v468 = vld [vmem:[#allocation2 + $0x10] sm:$0xff]
        %472 = vrot.lane.b32.xlu0 %v466, 106
        %v473 = vpop.permute.xlu0 %472
        %474 = vrot.lane.b32.xlu0 %v467, 106
        %v475 = vpop.permute.xlu0 %474
        %476 = vrot.lane.b32.xlu0 %v468, 106
        %v477 = vpop.permute.xlu0 %476
        %vm478 = vcmask 867328
        %v479 = vsel %vm478, %v473, %v475
        %v480 = vsel %vm478, %v475, %v477
        %483 = vst [vmem:[#allocation3 + $0x90] sm:$0xff] %v479
        %484 = vst [vmem:[#allocation3 + $0x98] sm:$0xff] %v480
        %v485 = vld [vmem:[#allocation2] sm:$0xff]
        %v486 = vld [vmem:[#allocation2 + $0x8] sm:$0xff]
        %v487 = vld [vmem:[#allocation2 + $0x10] sm:$0xff]
        %491 = vrot.lane.b32.xlu0 %v485, 18
        %v492 = vpop.permute.xlu0 %491
        %493 = vrot.lane.b32.xlu0 %v486, 18
        %v494 = vpop.permute.xlu0 %493
        %495 = vrot.lane.b32.xlu0 %v487, 18
        %v496 = vpop.permute.xlu0 %495
        %vm497 = vcmask 146432
        %v498 = vsel %vm497, %v492, %v494
        %v499 = vsel %vm497, %v494, %v496
        %502 = vst [vmem:[#allocation3 + $0xa0] sm:$0xff] %v498
        %503 = vst [vmem:[#allocation3 + $0xa8] sm:$0xff] %v499
        %v504 = vld [vmem:[#allocation2] sm:$0xff]
        %v505 = vld [vmem:[#allocation2 + $0x8] sm:$0xff]
        %506 = vst [vmem:[#allocation3 + $0xb0] sm:$0xff] %v504
        %507 = vst [vmem:[#allocation3 + $0xb8] sm:$0xff] %v505
        %v508 = vld [vmem:[#allocation2 + $0x8] sm:$0xff]
        %v509 = vld [vmem:[#allocation2 + $0x10] sm:$0xff]
        %v510 = vld [vmem:[#allocation2 + $0x18] sm:$0xff]
        %514 = vrot.lane.b32.xlu0 %v508, 124
        %v515 = vpop.permute.xlu0 %514
        %516 = vrot.lane.b32.xlu0 %v509, 124
        %v517 = vpop.permute.xlu0 %516
        %518 = vrot.lane.b32.xlu0 %v510, 124
        %v519 = vpop.permute.xlu0 %518
        %vm520 = vcmask 1014784
        %v521 = vsel %vm520, %v515, %v517
        %v522 = vsel %vm520, %v517, %v519
        %525 = vst [vmem:[#allocation3 + $0xc0] sm:$0xff] %v521
        %526 = vst [vmem:[#allocation3 + $0xc8] sm:$0xff] %v522
        %v527 = vld [vmem:[%s2] sm:$0xff]
        %v528 = vld [vmem:[#allocation3] sm:$0xff]
        %v529 = vld [vmem:[#allocation3 + $0x8] sm:$0xff]
        %v530 = vld [vmem:[#allocation3 + $0x10] sm:$0xff]
        %v531 = vld [vmem:[#allocation3 + $0x18] sm:$0xff]
        %v532 = vld [vmem:[#allocation3 + $0x20] sm:$0xff]
        %v533 = vld [vmem:[#allocation3 + $0x28] sm:$0xff]
        %v534 = vld [vmem:[#allocation3 + $0x30] sm:$0xff]
        %v535 = vld [vmem:[#allocation3 + $0x38] sm:$0xff]
        %v536 = vld [vmem:[#allocation3 + $0x40] sm:$0xff]
        %v537 = vld [vmem:[#allocation3 + $0x48] sm:$0xff]
        %v538 = vld [vmem:[#allocation3 + $0x50] sm:$0xff]
        %v539 = vld [vmem:[#allocation3 + $0x58] sm:$0xff]
        %v540 = vld [vmem:[#allocation3 + $0x60] sm:$0xff]
        %v541 = vld [vmem:[#allocation3 + $0x68] sm:$0xff]
        %v542 = vld [vmem:[#allocation3 + $0x70] sm:$0xff]
        %v543 = vld [vmem:[#allocation3 + $0x78] sm:$0xff]
        %v544 = vld [vmem:[#allocation3 + $0x80] sm:$0xff]
        %v545 = vld [vmem:[#allocation3 + $0x88] sm:$0xff]
        %v546 = vld [vmem:[#allocation3 + $0x90] sm:$0xff]
        %v547 = vld [vmem:[#allocation3 + $0x98] sm:$0xff]
        %v548 = vld [vmem:[#allocation3 + $0xa0] sm:$0xff]
        %v549 = vld [vmem:[#allocation3 + $0xa8] sm:$0xff]
        %v550 = vld [vmem:[#allocation3 + $0xb0] sm:$0xff]
        %v551 = vld [vmem:[#allocation3 + $0xb8] sm:$0xff]
        %v552 = vld [vmem:[#allocation3 + $0xc0] sm:$0xff]
        %v553 = vld [vmem:[#allocation3 + $0xc8] sm:$0xff]
        %v554 = vld [vmem:[%s3] sm:$0xff]
        %556 = vset.pattern.permute.xlu0 0
        %557 = vperm.xlu0 %556, %v554
        %v558 = vpop.permute.xlu0 %557
        %vm560 = vcmask 850944
        %v562 = vsel %vm560, %v527, 0
        %564 = vmatprep.subr.mxu0 0.0
        %565 = vmatpush1.msra.mxu0 0.0
        %566 = vmatprep.subr.mxu0 0.0
        %567 = vmatpush1.msra.mxu0 0.0
        %568 = vmatprep.subr.mxu0 0.0
        %569 = vmatpush1.msra.mxu0 0.0
        %570 = vmatprep.subr.mxu0 %v553
        %571 = vmatpush1.msra.mxu0 %v552
        %572 = vmatprep.subr.mxu0 %v551
        %573 = vmatpush1.msra.mxu0 %v550
        %574 = vmatprep.subr.mxu0 %v549
        %575 = vmatpush1.msra.mxu0 %v548
        %576 = vmatprep.subr.mxu0 %v547
        %577 = vmatpush1.msra.mxu0 %v546
        %578 = vmatprep.subr.mxu0 %v545
        %579 = vmatpush1.msra.mxu0 %v544
        %580 = vmatprep.subr.mxu0 %v543
        %581 = vmatpush1.msra.mxu0 %v542
        %582 = vmatprep.subr.mxu0 %v541
        %583 = vmatpush1.msra.mxu0 %v540
        %584 = vmatprep.subr.mxu0 %v539
        %585 = vmatpush1.msra.mxu0 %v538
        %586 = vmatprep.subr.mxu0 %v537
        %587 = vmatpush1.msra.mxu0 %v536
        %588 = vmatprep.subr.mxu0 %v535
        %589 = vmatpush1.msra.mxu0 %v534
        %590 = vmatprep.subr.mxu0 %v533
        %591 = vmatpush1.msra.mxu0 %v532
        %592 = vmatprep.subr.mxu0 %v531
        %593 = vmatpush1.msra.mxu0 %v530
        %594 = vmatprep.subr.mxu0 %v529
        %595 = vmatpush1.msra.mxu0 %v528
        %596 = vmatprep.subr.mxu0 0.0
        %597 = vmatpush2.msra.mxu0 0.0
        %598 = vmatprep.subr.mxu0 0.0
        %599 = vmatpush2.msra.mxu0 0.0
        %600 = vmatprep.subr.mxu0 0.0
        %601 = vmatpush2.msra.mxu0 0.0
        %602 = vmatprep.subr.mxu0 0.0
        %603 = vmatpush2.msra.mxu0 0.0
        %604 = vmatprep.subr.mxu0 0.0
        %605 = vmatpush2.msra.mxu0 0.0
        %606 = vmatprep.subr.mxu0 0.0
        %607 = vmatpush2.msra.mxu0 0.0
        %608 = vmatprep.subr.mxu0 0.0
        %609 = vmatpush2.msra.mxu0 0.0
        %610 = vmatprep.subr.mxu0 0.0
        %611 = vmatpush2.msra.mxu0 0.0
        %612 = vmatprep.subr.mxu0 0.0
        %613 = vmatpush2.msra.mxu0 0.0
        %614 = vmatprep.subr.mxu0 0.0
        %615 = vmatpush2.msra.mxu0 0.0
        %616 = vmatprep.subr.mxu0 0.0
        %617 = vmatpush2.msra.mxu0 0.0
        %618 = vmatprep.subr.mxu0 0.0
        %619 = vmatpush2.msra.mxu0 0.0
        %620 = vmatprep.subr.mxu0 0.0
        %621 = vmatpush2.msra.mxu0 0.0
        %622 = vmatprep.subr.mxu0 0.0
        %623 = vmatpush2.msra.mxu0 0.0
        %624 = vmatprep.subr.mxu0 0.0
        %625 = vmatpush2.msra.mxu0 0.0
        %626 = vmatprep.subr.mxu0 0.0
        %627 = vmatpush2.msra.mxu0 0.0
        %628 = vmatprep.mubr.f32.mxu0 0.0
        %629 = vmatmul.mubr.f32.gmra.mxu0 %v562
        %v630 = vpop.f32.mrf.mxu0
        %v631 = vadd.f32 %v558, %v630
        %v632 = vpop.f32.mrf.mxu0
        %v633 = vadd.f32 %v558, %v632
        %634 = vdwg.mxu0
        %635 = vst [vmem:[%s272] sm:$0xff] %v631
        %636 = vst [vmem:[%s272 + $0x8] sm:$0xff] %v633
        %s637 = sand.u32 %s132, 1
        %s638 = scalar_lea.sflag [#allocation6], %s637
        %s639 = sand.u32 %s132, 1
        %s640 = smul.addr %s639, 16
        %s641 = scalar_lea.vmem [#allocation9], %s640
        // Predicated region
        $region45: #{tpu_custom_call.1} parent=35 // pred_check
          %p642 = pneg %p142
        $region46: #{tpu_custom_call.1} parent=35 // pred_check_branch
          %644 = sbr.rel (%p642) target = $region48
        $region47: #{tpu_custom_call.1} parent=35 // pred_region
          %s645 = smul.u32 2, %s24
          %s647 = ssub.s32 256, 256
          %648 = vsyncadd %s638, %s647
          %s649 = smul.addr %s645, 128
          %s650 = scalar_lea.hbm %s4, %s649
          %s652 = sshll.u32 %s641, 4
          %s653 = int_to_ptr.vmem [resolvable:$true] %s652
          %655 = dma.vmem_to_hbm [thread:$0]  %s653, 256, %s650, %s638
        $region48: #{tpu_custom_call.1} parent=35 // pred_fallthru
          _
      $region36: #{tpu_custom_call.1} parent=5 // pred_fallthru
        _
      %p656 = scmp.le.s32.totalorder 2, %s19
      // Predicated region
      $region49: #{tpu_custom_call.1} parent=5 // pred_check
        %p657 = pneg %p656
      $region50: #{tpu_custom_call.1} parent=5 // pred_check_branch
        %659 = sbr.rel (%p657) target = $region52
      $region51: #{tpu_custom_call.1} parent=5 // pred_region
        %s660 = ssub.s32 %s19, 2
        // Predicated region
        $region53: #{tpu_custom_call.1} parent=51 // pred_check
          %p661 = pneg %p148
        $region54: #{tpu_custom_call.1} parent=51 // pred_check_branch
          %663 = sbr.rel (%p661) target = $region56
        $region55: #{tpu_custom_call.1} parent=51 // pred_region
          %s664 = sand.u32 %s133, 1
          %s665 = scalar_lea.sflag [#allocation6], %s664
          %s666 = sand.u32 %s133, 1
          %s667 = smul.addr %s666, 16
          %s668 = scalar_lea.vmem [#allocation9], %s667
          %669 = dma.done %s665, 256
        $region56: #{tpu_custom_call.1} parent=51 // pred_fallthru
          _
      $region52: #{tpu_custom_call.1} parent=5 // pred_fallthru
        _
    $region6: #{tpu_custom_call.1} parent=1 // loop_footer
      %s23 = sadd.s32 1, %s19
    $region7: #{tpu_custom_call.1} parent=1 // loop_footer_branch
      %18 = sbr.rel target = $region3
    $region8: #{tpu_custom_call.1} parent=1 // loop_exit
      _
    %670 = vsyncpa [#allocation5], 1
    %s671 = scalar_lea.sflag [#allocation5], 1
    %672 = vsyncpa %s671, 1
    %673 = vsyncpa [#allocation8], 1
    %s674 = scalar_lea.sflag [#allocation8], 1
    %675 = vsyncpa %s674, 1
    %676 = vsyncpa [#allocation6], 1
    %s677 = scalar_lea.sflag [#allocation6], 1
    %678 = vsyncpa %s677, 1

</llo_original>
